<compile_context>
chip_gen: v7x
topology: tpu7x:2x2x1
jax: 0.10.0
libtpu: 0.0.40
codegen_flags: <defaults>
</compile_context>

<pallas_src>
import functools

import jax
import jax.numpy as jnp
from jax.experimental import pallas as pl
from jax.experimental.pallas import tpu as pltpu


def _round_up(n, m):
    return ((n + m - 1) // m) * m


def _mlp_kernel(x_ref, w1_ref, b1_ref, w2_ref, b2_ref, o_ref):
    # Hot path: two MXU matmuls + bias add + ReLU, fused per batch tile.
    x = x_ref[...]                                               # (TB, D)
    h = jnp.dot(x, w1_ref[...], preferred_element_type=jnp.float32)
    h = jnp.maximum(h + b1_ref[...], 0.0)                        # (TB, 128) ReLU
    y = jnp.dot(h, w2_ref[...], preferred_element_type=jnp.float32)
    o_ref[...] = (y + b2_ref[...]).astype(o_ref.dtype)           # (TB, C_pad)


@functools.partial(jax.jit, static_argnames=("tb",))
def simple_nn_forward(x, w1, b1, w2, b2, *, tb=512):
    """x: (B, D) f32; w1: (D, 128); b1: (1, 128); w2: (128, C); b2: (1, C)."""
    B, D = x.shape
    H = w1.shape[1]
    C = w2.shape[1]

    # Lane-dense padded output width (biggest single store-path lever).
    C_pad = _round_up(C, 128)
    # Batch tile: multiple of 128 rows for MXU occupancy, capped so a tiny
    # batch doesn't force a huge padded tile; tb<=2048 keeps well inside
    # v7x's 64 MiB VMEM for these feature sizes.
    TB = min(tb, _round_up(B, 128))
    B_pad = _round_up(B, TB)

    # Zero-pad batch rows and the narrow output features (sliced off below).
    if B_pad != B:
        x = jnp.pad(x, ((0, B_pad - B), (0, 0)))
    if C_pad != C:
        w2 = jnp.pad(w2, ((0, 0), (0, C_pad - C)))
        b2 = jnp.pad(b2, ((0, 0), (0, C_pad - C)))

    out = pl.pallas_call(
        _mlp_kernel,
        out_shape=jax.ShapeDtypeStruct((B_pad, C_pad), jnp.float32),
        grid_spec=pl.GridSpec(
            grid=(B_pad // TB,),
            in_specs=[
                pl.BlockSpec((TB, D), lambda i: (i, 0)),    # x: tiled over batch
                pl.BlockSpec((D, H), lambda i: (0, 0)),     # w1: resident
                pl.BlockSpec((1, H), lambda i: (0, 0)),     # b1: resident
                pl.BlockSpec((H, C_pad), lambda i: (0, 0)), # w2: resident
                pl.BlockSpec((1, C_pad), lambda i: (0, 0)), # b2: resident
            ],
            out_specs=pl.BlockSpec((TB, C_pad), lambda i: (i, 0)),
        ),
        compiler_params=pltpu.CompilerParams(
            # Batch tiles are independent -> shard across v7x's 2 TCs.
            dimension_semantics=("parallel",),
        ),
    )(x, w1, b1, w2, b2)

    # Strip batch / feature padding.
    return out[:B, :C]


if __name__ == "__main__":
    # Small shapes consistent with the module's forward: x is (batch, input_dim).
    batch, input_dim, hidden, num_classes = 8, 32, 128, 10

    key = jax.random.PRNGKey(0)
    kx, kw1, kb1, kw2, kb2 = jax.random.split(key, 5)

    x = jax.random.normal(kx, (batch, input_dim), dtype=jnp.float32)

    # Deterministic parameter init (PyTorch Linear weight is (out, in); we keep
    # the transposed (in, out) layout for the kernel).
    bound1 = 1.0 / jnp.sqrt(input_dim)
    w1 = jax.random.uniform(kw1, (input_dim, hidden), jnp.float32, -bound1, bound1)
    b1 = jax.random.uniform(kb1, (1, hidden), jnp.float32, -bound1, bound1)
    bound2 = 1.0 / jnp.sqrt(hidden)
    w2 = jax.random.uniform(kw2, (hidden, num_classes), jnp.float32, -bound2, bound2)
    b2 = jax.random.uniform(kb2, (1, num_classes), jnp.float32, -bound2, bound2)

    out = simple_nn_forward(x, w1, b1, w2, b2)
    out = jax.block_until_ready(out)

    # Pure-JAX reference check (same semantics as the PyTorch forward).
    ref = jnp.maximum(x @ w1 + b1, 0.0) @ w2 + b2
    assert out.shape == (batch, num_classes)
    assert jnp.allclose(out, ref, atol=1e-5, rtol=1e-5)

    print("KERNEL_OK")
</pallas_src>

<mosaic_0001>
module attributes {stable_mosaic.version = 11 : i64} {
  func.func @_mlp_kernel(%arg0: i32, %arg1: memref<128x32xf32, #tpu.memory_space<vmem>>, %arg2: memref<32x128xf32, #tpu.memory_space<vmem>>, %arg3: memref<1x128xf32, #tpu.memory_space<vmem>>, %arg4: memref<128x128xf32, #tpu.memory_space<vmem>>, %arg5: memref<1x128xf32, #tpu.memory_space<vmem>>, %arg6: memref<128x128xf32, #tpu.memory_space<vmem>>) attributes {dimension_semantics = [#tpu.dimension_semantics<parallel>], iteration_bounds = array<i64: 1>, scalar_prefetch = 0 : i64, scratch_operands = 0 : i64, tpu.core_type = #tpu.core_type<tc>, window_params = [{transform_indices = @transform_0, window_bounds = array<i64: 128, 32>}, {pipeline_mode = #tpu.pipeline_mode<synchronous>, transform_indices = @transform_1, window_bounds = array<i64: 32, 128>}, {pipeline_mode = #tpu.pipeline_mode<synchronous>, transform_indices = @transform_2, window_bounds = array<i64: 1, 128>}, {pipeline_mode = #tpu.pipeline_mode<synchronous>, transform_indices = @transform_3, window_bounds = array<i64: 128, 128>}, {pipeline_mode = #tpu.pipeline_mode<synchronous>, transform_indices = @transform_4, window_bounds = array<i64: 1, 128>}, {transform_indices = @transform_5, window_bounds = array<i64: 128, 128>}]} {
    %c0 = arith.constant 0 : index
    %c0_0 = arith.constant 0 : index
    %0 = vector.load %arg1[%c0, %c0_0] : memref<128x32xf32, #tpu.memory_space<vmem>>, vector<128x32xf32>
    %c0_1 = arith.constant 0 : index
    %c0_2 = arith.constant 0 : index
    %1 = vector.load %arg2[%c0_1, %c0_2] : memref<32x128xf32, #tpu.memory_space<vmem>>, vector<32x128xf32>
    %cst = arith.constant dense<0.000000e+00> : vector<128x128xf32>
    %2 = tpu.matmul %0, %1, %cst {dimension_numbers = #tpu.dot_dimension_numbers<[1], [0], [0], [1], [0, 0, 1, 1], [], []>} : vector<128x32xf32>, vector<32x128xf32>, vector<128x128xf32> -> vector<128x128xf32>
    %c0_3 = arith.constant 0 : index
    %c0_4 = arith.constant 0 : index
    %3 = vector.load %arg3[%c0_3, %c0_4] : memref<1x128xf32, #tpu.memory_space<vmem>>, vector<1x128xf32>
    %4 = vector.broadcast %3 : vector<1x128xf32> to vector<128x128xf32>
    %5 = arith.addf %2, %4 : vector<128x128xf32>
    %cst_5 = arith.constant 0.000000e+00 : f32
    %6 = vector.broadcast %cst_5 : f32 to vector<128x128xf32>
    %7 = arith.maximumf %5, %6 : vector<128x128xf32>
    %c0_6 = arith.constant 0 : index
    %c0_7 = arith.constant 0 : index
    %8 = vector.load %arg4[%c0_6, %c0_7] : memref<128x128xf32, #tpu.memory_space<vmem>>, vector<128x128xf32>
    %cst_8 = arith.constant dense<0.000000e+00> : vector<128x128xf32>
    %9 = tpu.matmul %7, %8, %cst_8 {dimension_numbers = #tpu.dot_dimension_numbers<[1], [0], [0], [1], [0, 0, 1, 1], [], []>} : vector<128x128xf32>, vector<128x128xf32>, vector<128x128xf32> -> vector<128x128xf32>
    %c0_9 = arith.constant 0 : index
    %c0_10 = arith.constant 0 : index
    %10 = vector.load %arg5[%c0_9, %c0_10] : memref<1x128xf32, #tpu.memory_space<vmem>>, vector<1x128xf32>
    %11 = vector.broadcast %10 : vector<1x128xf32> to vector<128x128xf32>
    %12 = arith.addf %9, %11 : vector<128x128xf32>
    %c0_11 = arith.constant 0 : index
    %c0_12 = arith.constant 0 : index
    %13 = vector.load %arg6[%c0_11, %c0_12] : memref<128x128xf32, #tpu.memory_space<vmem>>, vector<128x128xf32>
    tpu.vector_store %arg6[%c0_11, %c0_12], %12 {strides = array<i32>} : memref<128x128xf32, #tpu.memory_space<vmem>>, vector<128x128xf32>,
    return
  }
  func.func @transform_0(%arg0: i32) -> (i32, i32) {
    %c0_i32 = arith.constant 0 : i32
    %c0_i32_0 = arith.constant 0 : i32
    return %arg0, %c0_i32 : i32, i32
  }
  func.func @transform_1(%arg0: i32) -> (i32, i32) {
    %c0_i32 = arith.constant 0 : i32
    %c0_i32_0 = arith.constant 0 : i32
    %c0_i32_1 = arith.constant 0 : i32
    return %c0_i32, %c0_i32_0 : i32, i32
  }
  func.func @transform_2(%arg0: i32) -> (i32, i32) {
    %c0_i32 = arith.constant 0 : i32
    %c0_i32_0 = arith.constant 0 : i32
    %c0_i32_1 = arith.constant 0 : i32
    return %c0_i32, %c0_i32_0 : i32, i32
  }
  func.func @transform_3(%arg0: i32) -> (i32, i32) {
    %c0_i32 = arith.constant 0 : i32
    %c0_i32_0 = arith.constant 0 : i32
    %c0_i32_1 = arith.constant 0 : i32
    return %c0_i32, %c0_i32_0 : i32, i32
  }
  func.func @transform_4(%arg0: i32) -> (i32, i32) {
    %c0_i32 = arith.constant 0 : i32
    %c0_i32_0 = arith.constant 0 : i32
    %c0_i32_1 = arith.constant 0 : i32
    return %c0_i32, %c0_i32_0 : i32, i32
  }
  func.func @transform_5(%arg0: i32) -> (i32, i32) {
    %c0_i32 = arith.constant 0 : i32
    %c0_i32_0 = arith.constant 0 : i32
    return %arg0, %c0_i32 : i32, i32
  }
}

</mosaic_0001>

<llo_original>
// kernel: simple_nn_forward.1
$region0: #{simple_nn_forward.1}
  #allocation0 [shape = 'u32[]', space=smem, size = 0x4, offset = 0x4, fixed_abs, tag = 'smem constant byte address 0x4 - core index']
  #allocation1 [shape = 'u32[144,128]{1,0:T(1,128)}', space=vmem, size = 0x12000, scoped, tag = 'internal scratch']
  %s0 = inlined_call_operand.vmem [shape: f32[128,32], index: 0, kind: input, shape index: {}]
  %s1 = inlined_call_operand.vmem [shape: f32[32,128], index: 1, kind: input, shape index: {}]
  %s2 = inlined_call_operand.vmem [shape: f32[1,128], index: 2, kind: input, shape index: {}]
  %s3 = inlined_call_operand.vmem [shape: f32[128,128], index: 3, kind: input, shape index: {}]
  %s4 = inlined_call_operand.vmem [shape: f32[1,128], index: 4, kind: input, shape index: {}]
  %s5 = inlined_call_operand.vmem [shape: f32[128,128], index: 5, kind: output, shape index: {}]
  %s6 = sld [smem:[#allocation0]]
  $region30: #{simple_nn_forward.1} parent=0
    _
  %s8 = ssub.s32 1, %s6
  %s9 = scalar_select 0, %s8, %s6
  // Predicated region
  $region2: #{simple_nn_forward.1} parent=0 // pred_check
    _
  $region3: #{simple_nn_forward.1} parent=0 // pred_check_branch
    %11 = sbr.rel (0) target = $region5
  $region4: #{simple_nn_forward.1} parent=0 // pred_region
    _
  $region5: #{simple_nn_forward.1} parent=0 // pred_fallthru
    _
  // Predicated region
  $region6: #{simple_nn_forward.1} parent=0 // pred_check
    _
  $region7: #{simple_nn_forward.1} parent=0 // pred_check_branch
    %13 = sbr.rel (0) target = $region9
  $region8: #{simple_nn_forward.1} parent=0 // pred_region
    _
  $region9: #{simple_nn_forward.1} parent=0 // pred_fallthru
    _
  // Predicated region
  $region10: #{simple_nn_forward.1} parent=0 // pred_check
    _
  $region11: #{simple_nn_forward.1} parent=0 // pred_check_branch
    %15 = sbr.rel (0) target = $region13
  $region12: #{simple_nn_forward.1} parent=0 // pred_region
    _
  $region13: #{simple_nn_forward.1} parent=0 // pred_fallthru
    _
  // Predicated region
  $region14: #{simple_nn_forward.1} parent=0 // pred_check
    _
  $region15: #{simple_nn_forward.1} parent=0 // pred_check_branch
    %17 = sbr.rel (0) target = $region17
  $region16: #{simple_nn_forward.1} parent=0 // pred_region
    _
  $region17: #{simple_nn_forward.1} parent=0 // pred_fallthru
    _
  // Predicated region
  $region18: #{simple_nn_forward.1} parent=0 // pred_check
    _
  $region19: #{simple_nn_forward.1} parent=0 // pred_check_branch
    %19 = sbr.rel (0) target = $region21
  $region20: #{simple_nn_forward.1} parent=0 // pred_region
    _
  $region21: #{simple_nn_forward.1} parent=0 // pred_fallthru
    _
  %v20 = vld [vmem:[%s0] sm:$0xff]
  %v21 = vld [vmem:[%s0 + $0x8] sm:$0xff]
  %v22 = vld [vmem:[%s0 + $0x10] sm:$0xff]
  %v23 = vld [vmem:[%s0 + $0x18] sm:$0xff]
  %v24 = vld [vmem:[%s0 + $0x20] sm:$0xff]
  %v25 = vld [vmem:[%s0 + $0x28] sm:$0xff]
  %v26 = vld [vmem:[%s0 + $0x30] sm:$0xff]
  %v27 = vld [vmem:[%s0 + $0x38] sm:$0xff]
  %v28 = vld [vmem:[%s0 + $0x40] sm:$0xff]
  %v29 = vld [vmem:[%s0 + $0x48] sm:$0xff]
  %v30 = vld [vmem:[%s0 + $0x50] sm:$0xff]
  %v31 = vld [vmem:[%s0 + $0x58] sm:$0xff]
  %v32 = vld [vmem:[%s0 + $0x60] sm:$0xff]
  %v33 = vld [vmem:[%s0 + $0x68] sm:$0xff]
  %v34 = vld [vmem:[%s0 + $0x70] sm:$0xff]
  %v35 = vld [vmem:[%s0 + $0x78] sm:$0xff]
  %v36 = vld [vmem:[%s1] sm:$0xff]
  %v37 = vld [vmem:[%s1 + $0x8] sm:$0xff]
  %v38 = vld [vmem:[%s1 + $0x10] sm:$0xff]
  %v39 = vld [vmem:[%s1 + $0x18] sm:$0xff]
  %v40 = vld [vmem:[%s2] sm:$0x1]
  %v42 = vlaneseq
  %v43 = vshrl.u32 %v42, 7
  %v44 = vsub.s32 0, %v43
  %v45 = vrot.slane %v40, %v44
  %vm47 = vcmask 261120
  %v49 = vsel %vm47, %v20, 0
  %v52 = vsel %vm47, %v21, 0
  %v55 = vsel %vm47, %v22, 0
  %v58 = vsel %vm47, %v23, 0
  %v61 = vsel %vm47, %v24, 0
  %v64 = vsel %vm47, %v25, 0
  %v67 = vsel %vm47, %v26, 0
  %v70 = vsel %vm47, %v27, 0
  %v73 = vsel %vm47, %v28, 0
  %v76 = vsel %vm47, %v29, 0
  %v79 = vsel %vm47, %v30, 0
  %v82 = vsel %vm47, %v31, 0
  %v85 = vsel %vm47, %v32, 0
  %v88 = vsel %vm47, %v33, 0
  %v91 = vsel %vm47, %v34, 0
  %v94 = vsel %vm47, %v35, 0
  %96 = vmatprep.subr.mxu0 0.0
  %97 = vmatpush1.msra.mxu0 %v36
  %98 = vmatprep.subr.mxu0 0.0
  %99 = vmatpush1.msra.mxu0 %v37
  %100 = vmatprep.subr.mxu0 0.0
  %101 = vmatpush1.msra.mxu0 %v38
  %102 = vmatprep.subr.mxu0 0.0
  %103 = vmatpush1.msra.mxu0 %v39
  %104 = vmatprep.subr.mxu0 0.0
  %105 = vmatpush1.msra.mxu0 0.0
  %106 = vmatprep.subr.mxu0 0.0
  %107 = vmatpush1.msra.mxu0 0.0
  %108 = vmatprep.subr.mxu0 0.0
  %109 = vmatpush1.msra.mxu0 0.0
  %110 = vmatprep.subr.mxu0 0.0
  %111 = vmatpush1.msra.mxu0 0.0
  %112 = vmatprep.subr.mxu0 0.0
  %113 = vmatpush1.msra.mxu0 0.0
  %114 = vmatprep.subr.mxu0 0.0
  %115 = vmatpush1.msra.mxu0 0.0
  %116 = vmatprep.subr.mxu0 0.0
  %117 = vmatpush1.msra.mxu0 0.0
  %118 = vmatprep.subr.mxu0 0.0
  %119 = vmatpush1.msra.mxu0 0.0
  %120 = vmatprep.subr.mxu0 0.0
  %121 = vmatpush1.msra.mxu0 0.0
  %122 = vmatprep.subr.mxu0 0.0
  %123 = vmatpush1.msra.mxu0 0.0
  %124 = vmatprep.subr.mxu0 0.0
  %125 = vmatpush1.msra.mxu0 0.0
  %126 = vmatprep.subr.mxu0 0.0
  %127 = vmatpush1.msra.mxu0 0.0
  %128 = vmatprep.subr.mxu0 0.0
  %129 = vmatpush1.msra.mxu0 0.0
  %130 = vmatprep.subr.mxu0 0.0
  %131 = vmatpush1.msra.mxu0 0.0
  %132 = vmatprep.subr.mxu0 0.0
  %133 = vmatpush1.msra.mxu0 0.0
  %134 = vmatprep.subr.mxu0 0.0
  %135 = vmatpush1.msra.mxu0 0.0
  %136 = vmatprep.subr.mxu0 0.0
  %137 = vmatpush1.msra.mxu0 0.0
  %138 = vmatprep.subr.mxu0 0.0
  %139 = vmatpush1.msra.mxu0 0.0
  %140 = vmatprep.subr.mxu0 0.0
  %141 = vmatpush1.msra.mxu0 0.0
  %142 = vmatprep.subr.mxu0 0.0
  %143 = vmatpush1.msra.mxu0 0.0
  %144 = vmatprep.subr.mxu0 0.0
  %145 = vmatpush1.msra.mxu0 0.0
  %146 = vmatprep.subr.mxu0 0.0
  %147 = vmatpush1.msra.mxu0 0.0
  %148 = vmatprep.subr.mxu0 0.0
  %149 = vmatpush1.msra.mxu0 0.0
  %150 = vmatprep.subr.mxu0 0.0
  %151 = vmatpush1.msra.mxu0 0.0
  %152 = vmatprep.subr.mxu0 0.0
  %153 = vmatpush1.msra.mxu0 0.0
  %154 = vmatprep.subr.mxu0 0.0
  %155 = vmatpush1.msra.mxu0 0.0
  %156 = vmatprep.subr.mxu0 0.0
  %157 = vmatpush1.msra.mxu0 0.0
  %158 = vmatprep.subr.mxu0 0.0
  %159 = vmatpush1.msra.mxu0 0.0
  %160 = vmatprep.mubr.f32.mxu0 0.0
  %161 = vmatmul.mubr.f32.gmra.mrb[0].mxu0 %v49
  %v162 = vpop.f32.mrb[0].mxu0
  %v163 = vadd.f32 %v45, %v162
  %v164 = vpop.f32.mrb[0].mxu0
  %165 = vmatprep.mubr.f32.mxu0 0.0
  %166 = vmatmul.mubr.f32.gmra.mrb[0].mxu0 %v52
  %v167 = vpop.f32.mrb[0].mxu0
  %v168 = vadd.f32 %v45, %v167
  %v169 = vpop.f32.mrb[0].mxu0
  %170 = vmatprep.mubr.f32.mxu0 0.0
  %171 = vmatmul.mubr.f32.gmra.mrb[0].mxu0 %v55
  %v172 = vpop.f32.mrb[0].mxu0
  %v173 = vadd.f32 %v45, %v172
  %v174 = vpop.f32.mrb[0].mxu0
  %175 = vmatprep.mubr.f32.mxu0 0.0
  %176 = vmatmul.mubr.f32.gmra.mrb[0].mxu0 %v58
  %v177 = vpop.f32.mrb[0].mxu0
  %v178 = vadd.f32 %v45, %v177
  %v179 = vpop.f32.mrb[0].mxu0
  %180 = vmatprep.mubr.f32.mxu0 0.0
  %181 = vmatmul.mubr.f32.gmra.mrb[0].mxu0 %v61
  %v182 = vpop.f32.mrb[0].mxu0
  %v183 = vadd.f32 %v45, %v182
  %v184 = vpop.f32.mrb[0].mxu0
  %185 = vmatprep.mubr.f32.mxu0 0.0
  %186 = vmatmul.mubr.f32.gmra.mrb[0].mxu0 %v64
  %v187 = vpop.f32.mrb[0].mxu0
  %v188 = vadd.f32 %v45, %v187
  %v189 = vpop.f32.mrb[0].mxu0
  %190 = vmatprep.mubr.f32.mxu0 0.0
  %191 = vmatmul.mubr.f32.gmra.mrb[0].mxu0 %v67
  %v192 = vpop.f32.mrb[0].mxu0
  %v193 = vadd.f32 %v45, %v192
  %v194 = vpop.f32.mrb[0].mxu0
  %195 = vmatprep.mubr.f32.mxu0 0.0
  %196 = vmatmul.mubr.f32.gmra.mrb[0].mxu0 %v70
  %v197 = vpop.f32.mrb[0].mxu0
  %v198 = vadd.f32 %v45, %v197
  %v199 = vpop.f32.mrb[0].mxu0
  %200 = vmatprep.mubr.f32.mxu0 0.0
  %201 = vmatmul.mubr.f32.gmra.mrb[0].mxu0 %v73
  %v202 = vpop.f32.mrb[0].mxu0
  %v203 = vadd.f32 %v45, %v202
  %v204 = vpop.f32.mrb[0].mxu0
  %205 = vmatprep.mubr.f32.mxu0 0.0
  %206 = vmatmul.mubr.f32.gmra.mrb[0].mxu0 %v76
  %v207 = vpop.f32.mrb[0].mxu0
  %v208 = vadd.f32 %v45, %v207
  %v209 = vpop.f32.mrb[0].mxu0
  %210 = vmatprep.mubr.f32.mxu0 0.0
  %211 = vmatmul.mubr.f32.gmra.mrb[0].mxu0 %v79
  %v212 = vpop.f32.mrb[0].mxu0
  %v213 = vadd.f32 %v45, %v212
  %v214 = vpop.f32.mrb[0].mxu0
  %215 = vmatprep.mubr.f32.mxu0 0.0
  %216 = vmatmul.mubr.f32.gmra.mrb[0].mxu0 %v82
  %v217 = vpop.f32.mrb[0].mxu0
  %v218 = vadd.f32 %v45, %v217
  %v219 = vpop.f32.mrb[0].mxu0
  %220 = vmatprep.mubr.f32.mxu0 0.0
  %221 = vmatmul.mubr.f32.gmra.mrb[0].mxu0 %v85
  %v222 = vpop.f32.mrb[0].mxu0
  %v223 = vadd.f32 %v45, %v222
  %v224 = vpop.f32.mrb[0].mxu0
  %225 = vmatprep.mubr.f32.mxu0 0.0
  %226 = vmatmul.mubr.f32.gmra.mrb[0].mxu0 %v88
  %v227 = vpop.f32.mrb[0].mxu0
  %v228 = vadd.f32 %v45, %v227
  %v229 = vpop.f32.mrb[0].mxu0
  %230 = vmatprep.mubr.f32.mxu0 0.0
  %231 = vmatmul.mubr.f32.gmra.mrb[0].mxu0 %v91
  %v232 = vpop.f32.mrb[0].mxu0
  %v233 = vadd.f32 %v45, %v232
  %v234 = vpop.f32.mrb[0].mxu0
  %235 = vmatprep.mubr.f32.mxu0 0.0
  %236 = vmatmul.mubr.f32.gmra.mrb[0].mxu0 %v94
  %v237 = vpop.f32.mrb[0].mxu0
  %v238 = vadd.f32 %v45, %v237
  %v239 = vpop.f32.mrb[0].mxu0
  %240 = vdwg.mxu0
  %v241 = vmax.f32 %v163, 0.0
  %v242 = vmax.f32 %v168, 0.0
  %v243 = vmax.f32 %v173, 0.0
  %v244 = vmax.f32 %v178, 0.0
  %v245 = vmax.f32 %v183, 0.0
  %v246 = vmax.f32 %v188, 0.0
  %v247 = vmax.f32 %v193, 0.0
  %v248 = vmax.f32 %v198, 0.0
  %v249 = vmax.f32 %v203, 0.0
  %v250 = vmax.f32 %v208, 0.0
  %v251 = vmax.f32 %v213, 0.0
  %v252 = vmax.f32 %v218, 0.0
  %v253 = vmax.f32 %v223, 0.0
  %v254 = vmax.f32 %v228, 0.0
  %v255 = vmax.f32 %v233, 0.0
  %v256 = vmax.f32 %v238, 0.0
  %v257 = vld [vmem:[%s3] sm:$0xff]
  %v258 = vld [vmem:[%s3 + $0x8] sm:$0xff]
  %v259 = vld [vmem:[%s3 + $0x10] sm:$0xff]
  %v260 = vld [vmem:[%s3 + $0x18] sm:$0xff]
  %v261 = vld [vmem:[%s3 + $0x20] sm:$0xff]
  %v262 = vld [vmem:[%s3 + $0x28] sm:$0xff]
  %v263 = vld [vmem:[%s3 + $0x30] sm:$0xff]
  %v264 = vld [vmem:[%s3 + $0x38] sm:$0xff]
  %v265 = vld [vmem:[%s3 + $0x40] sm:$0xff]
  %v266 = vld [vmem:[%s3 + $0x48] sm:$0xff]
  %v267 = vld [vmem:[%s3 + $0x50] sm:$0xff]
  %v268 = vld [vmem:[%s3 + $0x58] sm:$0xff]
  %v269 = vld [vmem:[%s3 + $0x60] sm:$0xff]
  %v270 = vld [vmem:[%s3 + $0x68] sm:$0xff]
  %v271 = vld [vmem:[%s3 + $0x70] sm:$0xff]
  %v272 = vld [vmem:[%s3 + $0x78] sm:$0xff]
  %v273 = vld [vmem:[%s4] sm:$0x1]
  %v275 = vlaneseq
  %v276 = vshrl.u32 %v275, 7
  %v277 = vsub.s32 0, %v276
  %v278 = vrot.slane %v273, %v277
  %280 = vmatprep.subr.mxu0 0.0
  %281 = vmatpush1.msra.mxu0 %v257
  %282 = vmatprep.subr.mxu0 0.0
  %283 = vmatpush1.msra.mxu0 %v258
  %284 = vmatprep.subr.mxu0 0.0
  %285 = vmatpush1.msra.mxu0 %v259
  %286 = vmatprep.subr.mxu0 0.0
  %287 = vmatpush1.msra.mxu0 %v260
  %288 = vmatprep.subr.mxu0 0.0
  %289 = vmatpush1.msra.mxu0 %v261
  %290 = vmatprep.subr.mxu0 0.0
  %291 = vmatpush1.msra.mxu0 %v262
  %292 = vmatprep.subr.mxu0 0.0
  %293 = vmatpush1.msra.mxu0 %v263
  %294 = vmatprep.subr.mxu0 0.0
  %295 = vmatpush1.msra.mxu0 %v264
  %296 = vmatprep.subr.mxu0 0.0
  %297 = vmatpush1.msra.mxu0 %v265
  %298 = vmatprep.subr.mxu0 0.0
  %299 = vmatpush1.msra.mxu0 %v266
  %300 = vmatprep.subr.mxu0 0.0
  %301 = vmatpush1.msra.mxu0 %v267
  %302 = vmatprep.subr.mxu0 0.0
  %303 = vmatpush1.msra.mxu0 %v268
  %304 = vmatprep.subr.mxu0 0.0
  %305 = vmatpush1.msra.mxu0 %v269
  %306 = vmatprep.subr.mxu0 0.0
  %307 = vmatpush1.msra.mxu0 %v270
  %308 = vmatprep.subr.mxu0 0.0
  %309 = vmatpush1.msra.mxu0 %v271
  %310 = vmatprep.subr.mxu0 0.0
  %311 = vmatpush1.msra.mxu0 %v272
  %312 = vmatprep.subr.mxu0 0.0
  %313 = vmatpush1.msra.mxu0 0.0
  %314 = vmatprep.subr.mxu0 0.0
  %315 = vmatpush1.msra.mxu0 0.0
  %316 = vmatprep.subr.mxu0 0.0
  %317 = vmatpush1.msra.mxu0 0.0
  %318 = vmatprep.subr.mxu0 0.0
  %319 = vmatpush1.msra.mxu0 0.0
  %320 = vmatprep.subr.mxu0 0.0
  %321 = vmatpush1.msra.mxu0 0.0
  %322 = vmatprep.subr.mxu0 0.0
  %323 = vmatpush1.msra.mxu0 0.0
  %324 = vmatprep.subr.mxu0 0.0
  %325 = vmatpush1.msra.mxu0 0.0
  %326 = vmatprep.subr.mxu0 0.0
  %327 = vmatpush1.msra.mxu0 0.0
  %328 = vmatprep.subr.mxu0 0.0
  %329 = vmatpush1.msra.mxu0 0.0
  %330 = vmatprep.subr.mxu0 0.0
  %331 = vmatpush1.msra.mxu0 0.0
  %332 = vmatprep.subr.mxu0 0.0
  %333 = vmatpush1.msra.mxu0 0.0
  %334 = vmatprep.subr.mxu0 0.0
  %335 = vmatpush1.msra.mxu0 0.0
  %336 = vmatprep.subr.mxu0 0.0
  %337 = vmatpush1.msra.mxu0 0.0
  %338 = vmatprep.subr.mxu0 0.0
  %339 = vmatpush1.msra.mxu0 0.0
  %340 = vmatprep.subr.mxu0 0.0
  %341 = vmatpush1.msra.mxu0 0.0
  %342 = vmatprep.subr.mxu0 0.0
  %343 = vmatpush1.msra.mxu0 0.0
  %344 = vmatprep.mubr.f32.mxu0 0.0
  %345 = vmatmul.mubr.f32.gmra.mrb[0].mxu0 %v241
  %v346 = vpop.f32.mrb[0].mxu0
  %v347 = vadd.f32 %v278, %v346
  %v348 = vpop.f32.mrb[0].mxu0
  %349 = vmatprep.mubr.f32.mxu0 0.0
  %350 = vmatmul.mubr.f32.gmra.mrb[0].mxu0 %v242
  %v351 = vpop.f32.mrb[0].mxu0
  %v352 = vadd.f32 %v278, %v351
  %v353 = vpop.f32.mrb[0].mxu0
  %354 = vmatprep.mubr.f32.mxu0 0.0
  %355 = vmatmul.mubr.f32.gmra.mrb[0].mxu0 %v243
  %v356 = vpop.f32.mrb[0].mxu0
  %v357 = vadd.f32 %v278, %v356
  %v358 = vpop.f32.mrb[0].mxu0
  %359 = vmatprep.mubr.f32.mxu0 0.0
  %360 = vmatmul.mubr.f32.gmra.mrb[0].mxu0 %v244
  %v361 = vpop.f32.mrb[0].mxu0
  %v362 = vadd.f32 %v278, %v361
  %v363 = vpop.f32.mrb[0].mxu0
  %364 = vmatprep.mubr.f32.mxu0 0.0
  %365 = vmatmul.mubr.f32.gmra.mrb[0].mxu0 %v245
  %v366 = vpop.f32.mrb[0].mxu0
  %v367 = vadd.f32 %v278, %v366
  %v368 = vpop.f32.mrb[0].mxu0
  %369 = vmatprep.mubr.f32.mxu0 0.0
  %370 = vmatmul.mubr.f32.gmra.mrb[0].mxu0 %v246
  %v371 = vpop.f32.mrb[0].mxu0
  %v372 = vadd.f32 %v278, %v371
  %v373 = vpop.f32.mrb[0].mxu0
  %374 = vmatprep.mubr.f32.mxu0 0.0
  %375 = vmatmul.mubr.f32.gmra.mrb[0].mxu0 %v247
  %v376 = vpop.f32.mrb[0].mxu0
  %v377 = vadd.f32 %v278, %v376
  %v378 = vpop.f32.mrb[0].mxu0
  %379 = vmatprep.mubr.f32.mxu0 0.0
  %380 = vmatmul.mubr.f32.gmra.mrb[0].mxu0 %v248
  %v381 = vpop.f32.mrb[0].mxu0
  %v382 = vadd.f32 %v278, %v381
  %v383 = vpop.f32.mrb[0].mxu0
  %384 = vmatprep.mubr.f32.mxu0 0.0
  %385 = vmatmul.mubr.f32.gmra.mrb[0].mxu0 %v249
  %v386 = vpop.f32.mrb[0].mxu0
  %v387 = vadd.f32 %v278, %v386
  %v388 = vpop.f32.mrb[0].mxu0
  %389 = vmatprep.mubr.f32.mxu0 0.0
  %390 = vmatmul.mubr.f32.gmra.mrb[0].mxu0 %v250
  %v391 = vpop.f32.mrb[0].mxu0
  %v392 = vadd.f32 %v278, %v391
  %v393 = vpop.f32.mrb[0].mxu0
  %394 = vmatprep.mubr.f32.mxu0 0.0
  %395 = vmatmul.mubr.f32.gmra.mrb[0].mxu0 %v251
  %v396 = vpop.f32.mrb[0].mxu0
  %v397 = vadd.f32 %v278, %v396
  %v398 = vpop.f32.mrb[0].mxu0
  %399 = vmatprep.mubr.f32.mxu0 0.0
  %400 = vmatmul.mubr.f32.gmra.mrb[0].mxu0 %v252
  %v401 = vpop.f32.mrb[0].mxu0
  %v402 = vadd.f32 %v278, %v401
  %v403 = vpop.f32.mrb[0].mxu0
  %404 = vmatprep.mubr.f32.mxu0 0.0
  %405 = vmatmul.mubr.f32.gmra.mrb[0].mxu0 %v253
  %v406 = vpop.f32.mrb[0].mxu0
  %v407 = vadd.f32 %v278, %v406
  %v408 = vpop.f32.mrb[0].mxu0
  %409 = vmatprep.mubr.f32.mxu0 0.0
  %410 = vmatmul.mubr.f32.gmra.mrb[0].mxu0 %v254
  %v411 = vpop.f32.mrb[0].mxu0
  %v412 = vadd.f32 %v278, %v411
  %v413 = vpop.f32.mrb[0].mxu0
  %414 = vmatprep.mubr.f32.mxu0 0.0
  %415 = vmatmul.mubr.f32.gmra.mrb[0].mxu0 %v255
  %v416 = vpop.f32.mrb[0].mxu0
  %v417 = vadd.f32 %v278, %v416
  %v418 = vpop.f32.mrb[0].mxu0
  %419 = vmatprep.mubr.f32.mxu0 0.0
  %420 = vmatmul.mubr.f32.gmra.mrb[0].mxu0 %v256
  %v421 = vpop.f32.mrb[0].mxu0
  %v422 = vadd.f32 %v278, %v421
  %v423 = vpop.f32.mrb[0].mxu0
  %424 = vdwg.mxu0
  %425 = vst [vmem:[%s5] sm:$0xff] %v347
  %426 = vst [vmem:[%s5 + $0x8] sm:$0xff] %v352
  %427 = vst [vmem:[%s5 + $0x10] sm:$0xff] %v357
  %428 = vst [vmem:[%s5 + $0x18] sm:$0xff] %v362
  %429 = vst [vmem:[%s5 + $0x20] sm:$0xff] %v367
  %430 = vst [vmem:[%s5 + $0x28] sm:$0xff] %v372
  %431 = vst [vmem:[%s5 + $0x30] sm:$0xff] %v377
  %432 = vst [vmem:[%s5 + $0x38] sm:$0xff] %v382
  %433 = vst [vmem:[%s5 + $0x40] sm:$0xff] %v387
  %434 = vst [vmem:[%s5 + $0x48] sm:$0xff] %v392
  %435 = vst [vmem:[%s5 + $0x50] sm:$0xff] %v397
  %436 = vst [vmem:[%s5 + $0x58] sm:$0xff] %v402
  %437 = vst [vmem:[%s5 + $0x60] sm:$0xff] %v407
  %438 = vst [vmem:[%s5 + $0x68] sm:$0xff] %v412
  %439 = vst [vmem:[%s5 + $0x70] sm:$0xff] %v417
  %440 = vst [vmem:[%s5 + $0x78] sm:$0xff] %v422
  // Predicated region
  $region22: #{simple_nn_forward.1} parent=0 // pred_check
    _
  $region23: #{simple_nn_forward.1} parent=0 // pred_check_branch
    %442 = sbr.rel (0) target = $region25
  $region24: #{simple_nn_forward.1} parent=0 // pred_region
    _
  $region25: #{simple_nn_forward.1} parent=0 // pred_fallthru
    _
  // Predicated region
  $region26: #{simple_nn_forward.1} parent=0 // pred_check
    _
  $region27: #{simple_nn_forward.1} parent=0 // pred_check_branch
    %444 = sbr.rel (0) target = $region29
  $region28: #{simple_nn_forward.1} parent=0 // pred_region
    _
  $region29: #{simple_nn_forward.1} parent=0 // pred_fallthru
    _

</llo_original>
